<compile_context>
chip_gen: v5e
topology: v5e:2x2
jax: 0.10.0
libtpu: 0.0.40
codegen_flags: <defaults>
</compile_context>

<pallas_src>
import functools

import jax
import jax.numpy as jnp
import numpy as np
from jax.experimental import pallas as pl
from jax.experimental.pallas import tpu as pltpu

_STAT_ROWS = 8  # sublane-aligned per-tile stats block: row0=sum, row1=sumsq


def _round_up(x, m):
    return ((x + m - 1) // m) * m


def _hardware_budgets():
    """Default (tile_m, vmem_limit_bytes) per TPU generation (safe fallback)."""
    try:
        vmem_cap = pltpu.get_tpu_info().vmem_capacity_bytes
    except Exception:           # unknown backend / API -> conservative (v7x-safe)
        vmem_cap = None
    if vmem_cap is not None and vmem_cap >= 100 * 1024 * 1024:
        return 1024, 64 * 1024 * 1024   # v5e / v6e: 128 MiB physical VMEM
    return 512, 32 * 1024 * 1024        # v7x (64 MiB / TC) or unknown


# ----------------------------------------------------------------------------
# Pass 1 (BN path): conv matmul; stream y; per-tile partial sum / sum-of-squares
# (no resident accumulator -> grid axis can be fully "parallel").
# ----------------------------------------------------------------------------
def _conv_stats_kernel(p_ref, w_ref, y_ref, stats_ref):
    y = jnp.dot(p_ref[...], w_ref[...], preferred_element_type=jnp.float32)
    y_ref[...] = y.astype(y_ref.dtype)
    stats_ref[...] = jnp.zeros_like(stats_ref)
    stats_ref[0:1, :] = jnp.sum(y, axis=0, keepdims=True)
    stats_ref[1:2, :] = jnp.sum(y * y, axis=0, keepdims=True)


# ----------------------------------------------------------------------------
# Pass 2 (BN path): pure elementwise per-channel affine + activation over y.
# ----------------------------------------------------------------------------
def _affine_act_kernel(y_ref, scale_ref, shift_ref, o_ref, *, relu):
    y = y_ref[...].astype(jnp.float32)
    y = y * scale_ref[...] + shift_ref[...]
    if relu:
        y = jnp.maximum(y, 0.0)
    o_ref[...] = y.astype(o_ref.dtype)


# ----------------------------------------------------------------------------
# Single pass (no-BN path): conv matmul + bias + activation.
# ----------------------------------------------------------------------------
def _conv_affine_act_kernel(p_ref, w_ref, scale_ref, shift_ref, o_ref, *, relu):
    y = jnp.dot(p_ref[...], w_ref[...], preferred_element_type=jnp.float32)
    y = y * scale_ref[...] + shift_ref[...]
    if relu:
        y = jnp.maximum(y, 0.0)
    o_ref[...] = y.astype(o_ref.dtype)


# ----------------------------------------------------------------------------
# Wrapper: upsample / concat / im2col glue in XLA, hot path in Pallas.
# ----------------------------------------------------------------------------
def block_forward(x, params, *, scale_factor=1, concat=None, batch_norm=True,
                  activation="relu", eps=1e-5, compute_dtype=jnp.bfloat16,
                  y_dtype=None, out_dtype=jnp.float32, tile_m=None,
                  vmem_limit_bytes=None):
    # TODO(synk): stride > 1 not implemented (module default stride=1 is used).
    if scale_factor > 1:  # nn.Upsample default mode='nearest'
        x = jnp.repeat(jnp.repeat(x, scale_factor, axis=2), scale_factor, axis=3)
    if concat is not None:
        x = jnp.concatenate([x, concat], axis=1)  # channel concat (NCHW dim=1)

    w, b = params["w"], params["b"]
    gamma, beta = params["gamma"], params["beta"]
    Cout, Cin, K, _ = w.shape
    N, C, H, W = x.shape
    assert C == Cin, f"conv expects {Cin} input channels, got {C}"

    if y_dtype is None:          # intermediate precision follows operand precision
        y_dtype = compute_dtype
    if tile_m is None or vmem_limit_bytes is None:
        d_tile, d_vmem = _hardware_budgets()
        if tile_m is None:
            tile_m = d_tile
        if vmem_limit_bytes is None:
            vmem_limit_bytes = d_vmem
    tile_m = int(tile_m)
    vmem_limit_bytes = int(vmem_limit_bytes)

    # im2col glue: NCHW -> NHWC, cast to matmul dtype, pad=1, 3x3 shifted views.
    # TODO(synk): fold this into the kernel via halo DMA (see header comment).
    x_nhwc = jnp.transpose(x, (0, 2, 3, 1)).astype(compute_dtype)
    xp = jnp.pad(x_nhwc, ((0, 0), (1, 1), (1, 1), (0, 0)))
    cols = [xp[:, ky:ky + H, kx:kx + W, :] for ky in range(K) for kx in range(K)]
    patches = jnp.concatenate(cols, axis=-1).reshape(N * H * W, K * K * Cin)

    M, KKC = patches.shape
    Cp = _round_up(Cout, 128)          # lane-dense output / full MXU columns

    # Tile rows of the im2col matrix; zero-row padding is excluded from the BN
    # statistics via exact per-tile row counts.
    tile_m = _round_up(max(8, min(tile_m, _round_up(M, 8))), 8)
    M_pad = _round_up(M, tile_m)
    if M_pad != M:
        patches = jnp.pad(patches, ((0, M_pad - M), (0, 0)))
    num_tiles = M_pad // tile_m

    # PyTorch OIHW weight -> (ky, kx, ci, co) rows matching the patch columns;
    # zero-pad output channels to Cp and cast to matmul dtype.
    w_mat = jnp.transpose(w, (2, 3, 1, 0)).reshape(KKC, Cout)
    w_pad = jnp.pad(w_mat, ((0, 0), (0, Cp - Cout))).astype(compute_dtype)

    relu = (activation == "relu")
    in_isz = jnp.dtype(compute_dtype).itemsize
    y_isz = jnp.dtype(y_dtype).itemsize
    out_isz = jnp.dtype(out_dtype).itemsize
    bytes_patches = M_pad * KKC * in_isz
    bytes_w = KKC * Cp * in_isz
    matmul_flops = 2 * M_pad * KKC * Cp
    cparams = pltpu.CompilerParams(dimension_semantics=("parallel",),
                                   vmem_limit_bytes=vmem_limit_bytes)

    if not batch_norm:
        # Single fused pass: conv + bias + activation.
        scale = jnp.ones((1, Cp), jnp.float32)
        shift = jnp.pad(b, (0, Cp - Cout)).astype(jnp.float32).reshape(1, Cp)
        out2d = pl.pallas_call(
            functools.partial(_conv_affine_act_kernel, relu=relu),
            out_shape=jax.ShapeDtypeStruct((M_pad, Cp), out_dtype),
            grid=(num_tiles,),
            in_specs=[pl.BlockSpec((tile_m, KKC), lambda i: (i, 0)),
                      pl.BlockSpec((KKC, Cp), lambda i: (0, 0)),
                      pl.BlockSpec((1, Cp), lambda i: (0, 0)),
                      pl.BlockSpec((1, Cp), lambda i: (0, 0))],
            out_specs=pl.BlockSpec((tile_m, Cp), lambda i: (i, 0)),
            compiler_params=cparams,
            cost_estimate=pl.CostEstimate(
                flops=matmul_flops + 3 * M_pad * Cp, transcendentals=0,
                bytes_accessed=(bytes_patches + bytes_w + 2 * Cp * 4
                                + M_pad * Cp * out_isz)),
        )(patches, w_pad, scale, shift)
    else:
        # ---- pass 1: conv matmul, stream y, per-tile partial statistics ----
        y2d, stats = pl.pallas_call(
            _conv_stats_kernel,
            out_shape=(jax.ShapeDtypeStruct((M_pad, Cp), y_dtype),
                       jax.ShapeDtypeStruct((num_tiles * _STAT_ROWS, Cp),
                                            jnp.float32)),
            grid=(num_tiles,),
            in_specs=[pl.BlockSpec((tile_m, KKC), lambda i: (i, 0)),
                      pl.BlockSpec((KKC, Cp), lambda i: (0, 0))],
            out_specs=[pl.BlockSpec((tile_m, Cp), lambda i: (i, 0)),
                       pl.BlockSpec((_STAT_ROWS, Cp), lambda i: (i, 0))],
            compiler_params=cparams,
            cost_estimate=pl.CostEstimate(
                flops=matmul_flops + 3 * M_pad * Cp, transcendentals=0,
                bytes_accessed=(bytes_patches + bytes_w
                                + M_pad * Cp * y_isz
                                + num_tiles * _STAT_ROWS * Cp * 4)),
        )(patches, w_pad)

        # ---- host: combine per-tile partials (tile-mean-centred merge) ----
        stats3 = stats.reshape(num_tiles, _STAT_ROWS, Cp)
        sums, sqs = stats3[:, 0, :], stats3[:, 1, :]
        counts = jnp.clip(M - jnp.arange(num_tiles) * tile_m, 0, tile_m)
        counts = counts.astype(jnp.float32)[:, None]
        mean_t = sums / jnp.maximum(counts, 1.0)
        m2_t = sqs - mean_t * sums                       # tile-centred sum of squares
        mean = jnp.sum(sums, axis=0) / float(M)          # exact batch mean
        m2 = (jnp.sum(m2_t, axis=0)
              + jnp.sum(counts * jnp.square(mean_t - mean[None, :]), axis=0))
        var = jnp.maximum(m2 / float(M), 0.0)            # biased batch variance
        inv_std = jax.lax.rsqrt(var + eps)
        gamma_p = jnp.pad(gamma, (0, Cp - Cout)).astype(jnp.float32)
        beta_p = jnp.pad(beta, (0, Cp - Cout)).astype(jnp.float32)
        scale = gamma_p * inv_std
        shift = beta_p - mean * scale
        # Conv bias intentionally dropped: cancelled exactly by the
        # training-mode batch-mean subtraction (reinstate for eval-mode /
        # running-stats variants).

        # ---- pass 2: elementwise affine + activation over the streamed y ----
        out2d = pl.pallas_call(
            functools.partial(_affine_act_kernel, relu=relu),
            out_shape=jax.ShapeDtypeStruct((M_pad, Cp), out_dtype),
            grid=(num_tiles,),
            in_specs=[pl.BlockSpec((tile_m, Cp), lambda i: (i, 0)),
                      pl.BlockSpec((1, Cp), lambda i: (0, 0)),
                      pl.BlockSpec((1, Cp), lambda i: (0, 0))],
            out_specs=pl.BlockSpec((tile_m, Cp), lambda i: (i, 0)),
            compiler_params=cparams,
            cost_estimate=pl.CostEstimate(
                flops=3 * M_pad * Cp, transcendentals=0,
                bytes_accessed=(M_pad * Cp * (y_isz + out_isz) + 2 * Cp * 4)),
        )(y2d, scale.reshape(1, Cp), shift.reshape(1, Cp))

    out = out2d[:M, :Cout].reshape(N, H, W, Cout)
    # TODO(synk): keep NHWC at the boundary to avoid this transpose when the
    # surrounding model is layout-flexible.
    return jnp.transpose(out, (0, 3, 1, 2))  # back to NCHW


# ----------------------------------------------------------------------------
# Pure-JAX reference (for correctness check only).  `compute_dtype` controls
# the conv operand precision so the bf16-matmul kernel is compared
# like-for-like (f32 accumulation in both cases).
# ----------------------------------------------------------------------------
def block_reference(x, params, *, scale_factor=1, concat=None, batch_norm=True,
                    activation="relu", eps=1e-5, compute_dtype=jnp.float32):
    if scale_factor > 1:
        x = jnp.repeat(jnp.repeat(x, scale_factor, axis=2), scale_factor, axis=3)
    if concat is not None:
        x = jnp.concatenate([x, concat], axis=1)
    out = jax.lax.conv_general_dilated(
        x.astype(compute_dtype), params["w"].astype(compute_dtype),
        window_strides=(1, 1), padding=((1, 1), (1, 1)),
        dimension_numbers=("NCHW", "OIHW", "NCHW"),
        preferred_element_type=jnp.float32)
    out = out + params["b"][None, :, None, None]
    if batch_norm:
        mean = jnp.mean(out, axis=(0, 2, 3), keepdims=True)
        var = jnp.mean(jnp.square(out - mean), axis=(0, 2, 3), keepdims=True)
        out = (out - mean) * jax.lax.rsqrt(var + eps)
        out = (out * params["gamma"][None, :, None, None]
               + params["beta"][None, :, None, None])
    if activation == "relu":
        out = jnp.maximum(out, 0.0)
    return out


def init_params(key, filters, kernel_size=3):
    cin, cout = filters
    kw, kb = jax.random.split(key)
    return {
        "w": 0.1 * jax.random.normal(kw, (cout, cin, kernel_size, kernel_size),
                                     jnp.float32),
        "b": 0.1 * jax.random.normal(kb, (cout,), jnp.float32),
        "gamma": jnp.ones((cout,), jnp.float32),   # BatchNorm2d default init
        "beta": jnp.zeros((cout,), jnp.float32),
    }


if __name__ == "__main__":
    key = jax.random.PRNGKey(0)
    k_p, k_x1, k_x2, k_c2 = jax.random.split(key, 4)

    params = init_params(k_p, filters=[4, 8], kernel_size=3)

    # Case 1: Block(filters=[4, 8]) defaults — no upsample, no concat.
    # f32 everywhere; tile_m=128 so the grid really runs 4 tiles.
    x1 = jax.random.normal(k_x1, (2, 4, 16, 16), jnp.float32)
    y1 = jax.block_until_ready(
        block_forward(x1, params, compute_dtype=jnp.float32, tile_m=128))
    r1 = block_reference(x1, params, compute_dtype=jnp.float32)
    np.testing.assert_allclose(np.asarray(y1), np.asarray(r1),
                               rtol=5e-4, atol=5e-4)

    # Case 2: Block(filters=[4, 8], scale_factor=2) with a skip `concat`.
    # bf16 matmul operands, f32 y intermediate / f32 output.
    x2 = jax.random.normal(k_x2, (2, 2, 8, 8), jnp.float32)
    c2 = jax.random.normal(k_c2, (2, 2, 16, 16), jnp.float32)
    y2 = jax.block_until_ready(
        block_forward(x2, params, scale_factor=2, concat=c2,
                      y_dtype=jnp.float32, tile_m=128))
    r2 = block_reference(x2, params, scale_factor=2, concat=c2,
                         compute_dtype=jnp.bfloat16)
    np.testing.assert_allclose(np.asarray(y2), np.asarray(r2),
                               rtol=2e-3, atol=2e-3)

    # Case 3: fully low-precision streaming path (bf16 y intermediate and bf16
    # final output) — the store-bound-optimal configuration from the review.
    y3 = jax.block_until_ready(
        block_forward(x2, params, scale_factor=2, concat=c2,
                      out_dtype=jnp.bfloat16, tile_m=128))
    np.testing.assert_allclose(np.asarray(y3.astype(jnp.float32)),
                               np.asarray(r2), rtol=4e-2, atol=4e-2)

    # Case 4: batch_norm=False exercises the fused single-pass conv+bias+ReLU.
    y4 = jax.block_until_ready(
        block_forward(x1, params, batch_norm=False,
                      compute_dtype=jnp.float32, tile_m=128))
    r4 = block_reference(x1, params, batch_norm=False,
                         compute_dtype=jnp.float32)
    np.testing.assert_allclose(np.asarray(y4), np.asarray(r4),
                               rtol=5e-4, atol=5e-4)

    print("KERNEL_OK")
</pallas_src>

<mosaic_0001>
module attributes {stable_mosaic.version = 11 : i64} {
  func.func @_conv_stats_kernel(%arg0: i32, %arg1: memref<128x36xf32, #tpu.memory_space<vmem>>, %arg2: memref<36x128xf32, #tpu.memory_space<vmem>>, %arg3: memref<128x128xf32, #tpu.memory_space<vmem>>, %arg4: memref<8x128xf32, #tpu.memory_space<vmem>>) attributes {dimension_semantics = [#tpu.dimension_semantics<parallel>], iteration_bounds = array<i64: 4>, scalar_prefetch = 0 : i64, scratch_operands = 0 : i64, tpu.core_type = #tpu.core_type<tc>, window_params = [{transform_indices = @transform_0, window_bounds = array<i64: 128, 36>}, {pipeline_mode = #tpu.pipeline_mode<synchronous>, transform_indices = @transform_1, window_bounds = array<i64: 36, 128>}, {transform_indices = @transform_2, window_bounds = array<i64: 128, 128>}, {transform_indices = @transform_3, window_bounds = array<i64: 8, 128>}]} {
    %c0 = arith.constant 0 : index
    %c0_0 = arith.constant 0 : index
    %0 = vector.load %arg1[%c0, %c0_0] : memref<128x36xf32, #tpu.memory_space<vmem>>, vector<128x36xf32>
    %c0_1 = arith.constant 0 : index
    %c0_2 = arith.constant 0 : index
    %1 = vector.load %arg2[%c0_1, %c0_2] : memref<36x128xf32, #tpu.memory_space<vmem>>, vector<36x128xf32>
    %cst = arith.constant dense<0.000000e+00> : vector<128x128xf32>
    %2 = tpu.matmul %0, %1, %cst {dimension_numbers = #tpu.dot_dimension_numbers<[1], [0], [0], [1], [0, 0, 1, 1], [], []>} : vector<128x36xf32>, vector<36x128xf32>, vector<128x128xf32> -> vector<128x128xf32>
    %c0_3 = arith.constant 0 : index
    %c0_4 = arith.constant 0 : index
    %3 = vector.load %arg3[%c0_3, %c0_4] : memref<128x128xf32, #tpu.memory_space<vmem>>, vector<128x128xf32>
    tpu.vector_store %arg3[%c0_3, %c0_4], %2 {strides = array<i32>} : memref<128x128xf32, #tpu.memory_space<vmem>>, vector<128x128xf32>,
    %cst_5 = arith.constant 0.000000e+00 : f32
    %4 = vector.broadcast %cst_5 : f32 to vector<8x128xf32>
    %c0_6 = arith.constant 0 : index
    %c0_7 = arith.constant 0 : index
    %5 = vector.load %arg4[%c0_6, %c0_7] : memref<8x128xf32, #tpu.memory_space<vmem>>, vector<8x128xf32>
    tpu.vector_store %arg4[%c0_6, %c0_7], %4 {strides = array<i32>} : memref<8x128xf32, #tpu.memory_space<vmem>>, vector<8x128xf32>,
    %cst_8 = arith.constant dense<0.000000e+00> : vector<128xf32>
    %6 = vector.multi_reduction <add>, %2, %cst_8 [0] : vector<128x128xf32> to vector<128xf32>
    %7 = vector.shape_cast %6 : vector<128xf32> to vector<1x128xf32>
    %c0_9 = arith.constant 0 : index
    %c0_10 = arith.constant 0 : index
    %8 = vector.load %arg4[%c0_9, %c0_10] : memref<8x128xf32, #tpu.memory_space<vmem>>, vector<1x128xf32>
    tpu.vector_store %arg4[%c0_9, %c0_10], %7 {strides = array<i32>} : memref<8x128xf32, #tpu.memory_space<vmem>>, vector<1x128xf32>,
    %9 = arith.mulf %2, %2 : vector<128x128xf32>
    %cst_11 = arith.constant dense<0.000000e+00> : vector<128xf32>
    %10 = vector.multi_reduction <add>, %9, %cst_11 [0] : vector<128x128xf32> to vector<128xf32>
    %11 = vector.shape_cast %10 : vector<128xf32> to vector<1x128xf32>
    %c1 = arith.constant 1 : index
    %c0_12 = arith.constant 0 : index
    %12 = vector.load %arg4[%c1, %c0_12] : memref<8x128xf32, #tpu.memory_space<vmem>>, vector<1x128xf32>
    tpu.vector_store %arg4[%c1, %c0_12], %11 {strides = array<i32>} : memref<8x128xf32, #tpu.memory_space<vmem>>, vector<1x128xf32>,
    return
  }
  func.func @transform_0(%arg0: i32) -> (i32, i32) {
    %c0_i32 = arith.constant 0 : i32
    %c0_i32_0 = arith.constant 0 : i32
    return %arg0, %c0_i32 : i32, i32
  }
  func.func @transform_1(%arg0: i32) -> (i32, i32) {
    %c0_i32 = arith.constant 0 : i32
    %c0_i32_0 = arith.constant 0 : i32
    %c0_i32_1 = arith.constant 0 : i32
    return %c0_i32, %c0_i32_0 : i32, i32
  }
  func.func @transform_2(%arg0: i32) -> (i32, i32) {
    %c0_i32 = arith.constant 0 : i32
    %c0_i32_0 = arith.constant 0 : i32
    return %arg0, %c0_i32 : i32, i32
  }
  func.func @transform_3(%arg0: i32) -> (i32, i32) {
    %c0_i32 = arith.constant 0 : i32
    %c0_i32_0 = arith.constant 0 : i32
    return %arg0, %c0_i32 : i32, i32
  }
}

</mosaic_0001>

<llo_original>
// kernel: tpu_custom_call.1
$region0: #{tpu_custom_call.1}
  #allocation0 [shape = 'u32[]', space=smem, size = 0x4, offset = 0x4, fixed_abs, tag = 'smem constant byte address 0x4 - core index']
  #allocation1 [shape = 'u32[72,128]{1,0:T(1,128)}', space=vmem, size = 0x9000, scoped, tag = 'internal scratch']
  %s0 = inlined_call_operand.vmem [shape: f32[512,36], index: 0, kind: input, shape index: {}]
  %s1 = inlined_call_operand.vmem [shape: f32[36,128], index: 1, kind: input, shape index: {}]
  %s2 = inlined_call_operand.hbm [shape: f32[512,128], index: 2, kind: output, shape index: {0}]
  %s3 = inlined_call_operand.hbm [shape: f32[32,128], index: 3, kind: output, shape index: {1}]
  %4 = xla_tuple %s2, %s3
  %s5 = sld [smem:[#allocation0]]
  $region49: #{tpu_custom_call.1} parent=0
    _
  %s7 = ssub.s32 1, %s5
  %s8 = scalar_select 0, %s7, %s5
  $region1: #{tpu_custom_call.1} parent=0
    #allocation2 [shape = 'u8[131072]{0}', space=vmem, size = 0x20000, scoped, tag = 'output window, operand 0']
    #allocation3 [shape = 's32[2]{0}', space=sflag, size = 0x8, scoped, tag = 'scoped memory for tpu_custom_call.1']
    #allocation4 [shape = 'u8[8192]{0}', space=vmem, size = 0x2000, scoped, tag = 'output window, operand 1']
    #allocation5 [shape = 's32[2]{0}', space=sflag, size = 0x8, scoped, tag = 'scoped memory for tpu_custom_call.1']
    %9 = vsyncpa [#allocation3], 0
    %s10 = scalar_lea.sflag [#allocation3], 1
    %11 = vsyncpa %s10, 0
    %12 = vsyncpa [#allocation5], 0
    %s13 = scalar_lea.sflag [#allocation5], 1
    %14 = vsyncpa %s13, 0
    loop: start=0, step=1, limit=6
    $region2: #{tpu_custom_call.1} parent=1 // loop_pre_header
      _
    $region3: #{tpu_custom_call.1} parent=1 // loop_header
      %s16 = sphi 0, %s20
      %p17 = scmp.ge.s32.totalorder %s16, 6
      %s26 = sphi 0, %s28
      %s29 = sphi 0, %s26
      %s30 = sphi 0, %s29
      %s46 = sphi 0, %s30
      %s50 = sphi 0, %s50
      %s52 = sphi 0, %s50
      %s53 = sphi 0, %s52
      %s67 = sphi 0, %s53
      %s73 = sphi 0, %s75
      %s76 = sphi 0, %s73
      %s77 = sphi 0, %s76
      %s93 = sphi 0, %s77
      %s99 = sphi 0, %s101
      %s102 = sphi 0, %s99
      %s103 = sphi 0, %s102
      %s119 = sphi 0, %s103
    $region4: #{tpu_custom_call.1} parent=1 // loop_header_branch
      %19 = sbr.rel (%p17) target = $region8
    $region5: #{tpu_custom_call.1} parent=1 // loop_body
      %s21 = ssub.s32 %s16, 1
      %s22 = ssub.s32 %s16, 2
      %s23 = sadd.s32 %s16, 1
      %s24 = ssub.s32 %s16, %s23
      %p25 = scmp.eq.s32.totalorder %s24, 0
      %s27 = sadd.s32 %s26, 1
      %s28 = scalar_select %p25, %s26, %s27
      %p31 = pneg %p25
      %p32 = scmp.eq.s32.totalorder %s16, 3
      %p33 = por %p31, %p32
      %p34 = scmp.ne.s32.totalorder %s26, %s29
      %p35 = scmp.eq.s32.totalorder %s16, 0
      %p36 = por %p34, %p35
      %p37 = scmp.ne.s32.totalorder %s26, %s29
      %p38 = scmp.eq.s32.totalorder %s21, 3
      %p39 = por %p37, %p38
      %p40 = scmp.ne.s32.totalorder %s29, %s30
      %p41 = scmp.eq.s32.totalorder %s21, 0
      %p42 = por %p40, %p41
      %p43 = scmp.ne.s32.totalorder %s29, %s30
      %p44 = scmp.eq.s32.totalorder %s22, 3
      %p45 = por %p43, %p44
      %p47 = scmp.ne.s32.totalorder %s30, %s46
      %p48 = scmp.eq.s32.totalorder %s22, 0
      %p49 = por %p47, %p48
      %s51 = sadd.s32 %s50, 1
      %p54 = scmp.eq.s32.totalorder %s16, 3
      %p55 = scmp.ne.s32.totalorder %s50, %s52
      %p56 = scmp.eq.s32.totalorder %s16, 0
      %p57 = por %p55, %p56
      %p58 = scmp.ne.s32.totalorder %s50, %s52
      %p59 = scmp.eq.s32.totalorder %s21, 3
      %p60 = por %p58, %p59
      %p61 = scmp.ne.s32.totalorder %s52, %s53
      %p62 = scmp.eq.s32.totalorder %s21, 0
      %p63 = por %p61, %p62
      %p64 = scmp.ne.s32.totalorder %s52, %s53
      %p65 = scmp.eq.s32.totalorder %s22, 3
      %p66 = por %p64, %p65
      %p68 = scmp.ne.s32.totalorder %s53, %s67
      %p69 = scmp.eq.s32.totalorder %s22, 0
      %p70 = por %p68, %p69
      %s71 = ssub.s32 %s16, %s23
      %p72 = scmp.eq.s32.totalorder %s71, 0
      %s74 = sadd.s32 %s73, 1
      %s75 = scalar_select %p72, %s73, %s74
      %p78 = pneg %p72
      %p79 = scmp.eq.s32.totalorder %s16, 3
      %p80 = por %p78, %p79
      %p81 = scmp.ne.s32.totalorder %s73, %s76
      %p82 = scmp.eq.s32.totalorder %s16, 0
      %p83 = por %p81, %p82
      %p84 = scmp.ne.s32.totalorder %s73, %s76
      %p85 = scmp.eq.s32.totalorder %s21, 3
      %p86 = por %p84, %p85
      %p87 = scmp.ne.s32.totalorder %s76, %s77
      %p88 = scmp.eq.s32.totalorder %s21, 0
      %p89 = por %p87, %p88
      %p90 = scmp.ne.s32.totalorder %s76, %s77
      %p91 = scmp.eq.s32.totalorder %s22, 3
      %p92 = por %p90, %p91
      %p94 = scmp.ne.s32.totalorder %s77, %s93
      %p95 = scmp.eq.s32.totalorder %s22, 0
      %p96 = por %p94, %p95
      %s97 = ssub.s32 %s16, %s23
      %p98 = scmp.eq.s32.totalorder %s97, 0
      %s100 = sadd.s32 %s99, 1
      %s101 = scalar_select %p98, %s99, %s100
      %p104 = pneg %p98
      %p105 = scmp.eq.s32.totalorder %s16, 3
      %p106 = por %p104, %p105
      %p107 = scmp.ne.s32.totalorder %s99, %s102
      %p108 = scmp.eq.s32.totalorder %s16, 0
      %p109 = por %p107, %p108
      %p110 = scmp.ne.s32.totalorder %s99, %s102
      %p111 = scmp.eq.s32.totalorder %s21, 3
      %p112 = por %p110, %p111
      %p113 = scmp.ne.s32.totalorder %s102, %s103
      %p114 = scmp.eq.s32.totalorder %s21, 0
      %p115 = por %p113, %p114
      %p116 = scmp.ne.s32.totalorder %s102, %s103
      %p117 = scmp.eq.s32.totalorder %s22, 3
      %p118 = por %p116, %p117
      %p120 = scmp.ne.s32.totalorder %s103, %s119
      %p121 = scmp.eq.s32.totalorder %s22, 0
      %p122 = por %p120, %p121
      %p123 = scmp.le.s32.totalorder 1, %s16
      %p124 = scmp.lt.s32.totalorder %s16, 5
      %p125 = pnand %p123, %p124
      %p126 = pneg %p125
      // Predicated region
      $region9: #{tpu_custom_call.1} parent=5 // pred_check
        _
      $region10: #{tpu_custom_call.1} parent=5 // pred_check_branch
        %128 = sbr.rel (%p125) target = $region12
      $region11: #{tpu_custom_call.1} parent=5 // pred_region
        %s129 = ssub.s32 %s16, 1
        // Predicated region
        $region13: #{tpu_custom_call.1} parent=11 // pred_check
          %p130 = pneg %p63
        $region14: #{tpu_custom_call.1} parent=11 // pred_check_branch
          %132 = sbr.rel (%p130) target = $region16
        $region15: #{tpu_custom_call.1} parent=11 // pred_region
          _
        $region16: #{tpu_custom_call.1} parent=11 // pred_fallthru
          _
      $region12: #{tpu_custom_call.1} parent=5 // pred_fallthru
        _
      %p133 = scmp.lt.s32.totalorder %s16, 4
      // Predicated region
      $region17: #{tpu_custom_call.1} parent=5 // pred_check
        %p134 = pneg %p133
      $region18: #{tpu_custom_call.1} parent=5 // pred_check_branch
        %136 = sbr.rel (%p134) target = $region20
      $region19: #{tpu_custom_call.1} parent=5 // pred_region
        // Predicated region
        $region21: #{tpu_custom_call.1} parent=19 // pred_check
          %p137 = pneg %p36
        $region22: #{tpu_custom_call.1} parent=19 // pred_check_branch
          %139 = sbr.rel (%p137) target = $region24
        $region23: #{tpu_custom_call.1} parent=19 // pred_region
          %s140 = smul.u32 16, %s16
          %p141 = scmp.lt.s32.totalorder %s140, 63
          %s142 = scalar_select %p141, %s140, 63
          %s143 = smul.addr %s142, 8
          %s144 = scalar_lea.vmem %s0, %s143
          %s145 = smul.u32 16, %s16
        $region24: #{tpu_custom_call.1} parent=19 // pred_fallthru
          _
      $region20: #{tpu_custom_call.1} parent=5 // pred_fallthru
        _
      %p146 = scmp.le.s32.totalorder 1, %s16
      %p147 = scmp.lt.s32.totalorder %s16, 5
      %p148 = pnand %p146, %p147
      %p149 = pneg %p148
      // Predicated region
      $region25: #{tpu_custom_call.1} parent=5 // pred_check
        _
      $region26: #{tpu_custom_call.1} parent=5 // pred_check_branch
        %151 = sbr.rel (%p148) target = $region28
      $region27: #{tpu_custom_call.1} parent=5 // pred_region
        %s152 = ssub.s32 %s16, 1
        %s153 = smul.u32 16, %s21
        %p154 = scmp.lt.s32.totalorder %s153, 63
        %s155 = scalar_select %p154, %s153, 63
        %s156 = smul.addr %s155, 8
        %s157 = scalar_lea.vmem %s0, %s156
        %p158 = pneg %p42
        %p159 = pneg %p39
        %p160 = pneg %p63
        %p161 = pneg %p60
        %p162 = pneg %p89
        %p163 = pneg %p86
        %s164 = sand.u32 %s76, 1
        %s165 = scalar_lea.sflag [#allocation3], %s164
        %s166 = sand.u32 %s76, 1
        %s167 = smul.addr %s166, 128
        %s168 = scalar_lea.vmem [#allocation2], %s167
        %p169 = pneg %p115
        %p170 = pneg %p112
        %s171 = sand.u32 %s102, 1
        %s172 = scalar_lea.sflag [#allocation5], %s171
        %s173 = sand.u32 %s102, 1
        %s174 = smul.addr %s173, 8
        %s175 = scalar_lea.vmem [#allocation4], %s174
        %s176 = smul.u32 16, %s21
        %p177 = scmp.lt.s32.totalorder %s176, 63
        %s178 = scalar_select %p177, %s176, 63
        %s179 = smul.addr %s178, 8
        %s180 = scalar_lea.vmem %s0, %s179
        %s181 = smul.u32 16, %s21
        %s182 = smul.u32 16, %s21
        %v183 = vld [vmem:[%s180] sm:$0xff]
        %v184 = vld [vmem:[%s180 + $0x8] sm:$0xff]
        %v185 = vld [vmem:[%s180 + $0x10] sm:$0xff]
        %v186 = vld [vmem:[%s180 + $0x18] sm:$0xff]
        %v187 = vld [vmem:[%s180 + $0x20] sm:$0xff]
        %v188 = vld [vmem:[%s180 + $0x28] sm:$0xff]
        %v189 = vld [vmem:[%s180 + $0x30] sm:$0xff]
        %v190 = vld [vmem:[%s180 + $0x38] sm:$0xff]
        %v191 = vld [vmem:[%s180 + $0x40] sm:$0xff]
        %v192 = vld [vmem:[%s180 + $0x48] sm:$0xff]
        %v193 = vld [vmem:[%s180 + $0x50] sm:$0xff]
        %v194 = vld [vmem:[%s180 + $0x58] sm:$0xff]
        %v195 = vld [vmem:[%s180 + $0x60] sm:$0xff]
        %v196 = vld [vmem:[%s180 + $0x68] sm:$0xff]
        %v197 = vld [vmem:[%s180 + $0x70] sm:$0xff]
        %v198 = vld [vmem:[%s180 + $0x78] sm:$0xff]
        %v199 = vld [vmem:[%s1] sm:$0xff]
        %v200 = vld [vmem:[%s1 + $0x8] sm:$0xff]
        %v201 = vld [vmem:[%s1 + $0x10] sm:$0xff]
        %v202 = vld [vmem:[%s1 + $0x18] sm:$0xff]
        %v203 = vld [vmem:[%s1 + $0x20] sm:$0xf]
        %vm204 = vcmask 293888
        %v206 = vsel %vm204, %v183, 0
        %v209 = vsel %vm204, %v184, 0
        %v212 = vsel %vm204, %v185, 0
        %v215 = vsel %vm204, %v186, 0
        %v218 = vsel %vm204, %v187, 0
        %v221 = vsel %vm204, %v188, 0
        %v224 = vsel %vm204, %v189, 0
        %v227 = vsel %vm204, %v190, 0
        %v230 = vsel %vm204, %v191, 0
        %v233 = vsel %vm204, %v192, 0
        %v236 = vsel %vm204, %v193, 0
        %v239 = vsel %vm204, %v194, 0
        %v242 = vsel %vm204, %v195, 0
        %v245 = vsel %vm204, %v196, 0
        %v248 = vsel %vm204, %v197, 0
        %v251 = vsel %vm204, %v198, 0
        %vm253 = vcmask 1043456
        %v255 = vsel %vm253, %v203, 0
        %257 = vmatpush.msra.mxu0 0.0
        %258 = vmatpush.msra.mxu0 0.0
        %259 = vmatpush.msra.mxu0 0.0
        %260 = vmatpush.msra.mxu0 0.0
        %261 = vmatpush.msra.mxu0 0.0
        %262 = vmatpush.msra.mxu0 0.0
        %263 = vmatpush.msra.mxu0 0.0
        %264 = vmatpush.msra.mxu0 0.0
        %265 = vmatpush.msra.mxu0 0.0
        %266 = vmatpush.msra.mxu0 0.0
        %267 = vmatpush.msra.mxu0 0.0
        %268 = vmatpush.msra.mxu0 %v255
        %269 = vmatpush.msra.mxu0 %v202
        %270 = vmatpush.msra.mxu0 %v201
        %271 = vmatpush.msra.mxu0 %v200
        %272 = vmatpush.msra.mxu0 %v199
        %273 = vmatmul.f32.gmra.mxu0 %v206
        %v274 = vpop.f32.mrf.mxu0
        %v275 = vadd.f32 0.0, %v274
        %276 = vmatmul.f32.gmra.mxu0 %v209
        %v277 = vpop.f32.mrf.mxu0
        %v278 = vadd.f32 0.0, %v277
        %279 = vmatmul.f32.gmra.mxu0 %v212
        %v280 = vpop.f32.mrf.mxu0
        %v281 = vadd.f32 0.0, %v280
        %282 = vmatmul.f32.gmra.mxu0 %v215
        %v283 = vpop.f32.mrf.mxu0
        %v284 = vadd.f32 0.0, %v283
        %285 = vmatmul.f32.gmra.mxu0 %v218
        %v286 = vpop.f32.mrf.mxu0
        %v287 = vadd.f32 0.0, %v286
        %288 = vmatmul.f32.gmra.mxu0 %v221
        %v289 = vpop.f32.mrf.mxu0
        %v290 = vadd.f32 0.0, %v289
        %291 = vmatmul.f32.gmra.mxu0 %v224
        %v292 = vpop.f32.mrf.mxu0
        %v293 = vadd.f32 0.0, %v292
        %294 = vmatmul.f32.gmra.mxu0 %v227
        %v295 = vpop.f32.mrf.mxu0
        %v296 = vadd.f32 0.0, %v295
        %297 = vmatmul.f32.gmra.mxu0 %v230
        %v298 = vpop.f32.mrf.mxu0
        %v299 = vadd.f32 0.0, %v298
        %300 = vmatmul.f32.gmra.mxu0 %v233
        %v301 = vpop.f32.mrf.mxu0
        %v302 = vadd.f32 0.0, %v301
        %303 = vmatmul.f32.gmra.mxu0 %v236
        %v304 = vpop.f32.mrf.mxu0
        %v305 = vadd.f32 0.0, %v304
        %306 = vmatmul.f32.gmra.mxu0 %v239
        %v307 = vpop.f32.mrf.mxu0
        %v308 = vadd.f32 0.0, %v307
        %309 = vmatmul.f32.gmra.mxu0 %v242
        %v310 = vpop.f32.mrf.mxu0
        %v311 = vadd.f32 0.0, %v310
        %312 = vmatmul.f32.gmra.mxu0 %v245
        %v313 = vpop.f32.mrf.mxu0
        %v314 = vadd.f32 0.0, %v313
        %315 = vmatmul.f32.gmra.mxu0 %v248
        %v316 = vpop.f32.mrf.mxu0
        %v317 = vadd.f32 0.0, %v316
        %318 = vmatmul.f32.gmra.mxu0 %v251
        %v319 = vpop.f32.mrf.mxu0
        %v320 = vadd.f32 0.0, %v319
        %321 = vdwg.mxu0
        %322 = vst [vmem:[%s168] sm:$0xff] %v275
        %323 = vst [vmem:[%s168 + $0x8] sm:$0xff] %v278
        %324 = vst [vmem:[%s168 + $0x10] sm:$0xff] %v281
        %325 = vst [vmem:[%s168 + $0x18] sm:$0xff] %v284
        %326 = vst [vmem:[%s168 + $0x20] sm:$0xff] %v287
        %327 = vst [vmem:[%s168 + $0x28] sm:$0xff] %v290
        %328 = vst [vmem:[%s168 + $0x30] sm:$0xff] %v293
        %329 = vst [vmem:[%s168 + $0x38] sm:$0xff] %v296
        %330 = vst [vmem:[%s168 + $0x40] sm:$0xff] %v299
        %331 = vst [vmem:[%s168 + $0x48] sm:$0xff] %v302
        %332 = vst [vmem:[%s168 + $0x50] sm:$0xff] %v305
        %333 = vst [vmem:[%s168 + $0x58] sm:$0xff] %v308
        %334 = vst [vmem:[%s168 + $0x60] sm:$0xff] %v311
        %335 = vst [vmem:[%s168 + $0x68] sm:$0xff] %v314
        %336 = vst [vmem:[%s168 + $0x70] sm:$0xff] %v317
        %337 = vst [vmem:[%s168 + $0x78] sm:$0xff] %v320
        %338 = vst [vmem:[%s175] sm:$0xff] 0.0
        %v339 = vadd.f32 %v275, %v278
        %v340 = vadd.f32 %v339, %v281
        %v341 = vadd.f32 %v340, %v284
        %v342 = vadd.f32 %v341, %v287
        %v343 = vadd.f32 %v342, %v290
        %v344 = vadd.f32 %v343, %v293
        %v345 = vadd.f32 %v344, %v296
        %v346 = vadd.f32 %v345, %v299
        %v347 = vadd.f32 %v346, %v302
        %v348 = vadd.f32 %v347, %v305
        %v349 = vadd.f32 %v348, %v308
        %v350 = vadd.f32 %v349, %v311
        %v351 = vadd.f32 %v350, %v314
        %v352 = vadd.f32 %v351, %v317
        %v353 = vadd.f32 %v352, %v320
        %v354 = vrot.slane %v353, 4
        %v355 = vadd.f32 %v353, %v354
        %v356 = vrot.slane %v355, 2
        %v357 = vadd.f32 %v355, %v356
        %v358 = vrot.slane %v357, 1
        %v359 = vadd.f32 %v357, %v358
        %360 = vst [vmem:[%s175] sm:$0x1] %v359
        %v361 = vmul.f32 %v275, %v275
        %v362 = vmul.f32 %v278, %v278
        %v363 = vmul.f32 %v281, %v281
        %v364 = vmul.f32 %v284, %v284
        %v365 = vmul.f32 %v287, %v287
        %v366 = vmul.f32 %v290, %v290
        %v367 = vmul.f32 %v293, %v293
        %v368 = vmul.f32 %v296, %v296
        %v369 = vmul.f32 %v299, %v299
        %v370 = vmul.f32 %v302, %v302
        %v371 = vmul.f32 %v305, %v305
        %v372 = vmul.f32 %v308, %v308
        %v373 = vmul.f32 %v311, %v311
        %v374 = vmul.f32 %v314, %v314
        %v375 = vmul.f32 %v317, %v317
        %v376 = vmul.f32 %v320, %v320
        %v377 = vadd.f32 %v361, %v362
        %v378 = vadd.f32 %v377, %v363
        %v379 = vadd.f32 %v378, %v364
        %v380 = vadd.f32 %v379, %v365
        %v381 = vadd.f32 %v380, %v366
        %v382 = vadd.f32 %v381, %v367
        %v383 = vadd.f32 %v382, %v368
        %v384 = vadd.f32 %v383, %v369
        %v385 = vadd.f32 %v384, %v370
        %v386 = vadd.f32 %v385, %v371
        %v387 = vadd.f32 %v386, %v372
        %v388 = vadd.f32 %v387, %v373
        %v389 = vadd.f32 %v388, %v374
        %v390 = vadd.f32 %v389, %v375
        %v391 = vadd.f32 %v390, %v376
        %v392 = vrot.slane %v391, 4
        %v393 = vadd.f32 %v391, %v392
        %v394 = vrot.slane %v393, 2
        %v395 = vadd.f32 %v393, %v394
        %v396 = vrot.slane %v395, 1
        %v397 = vadd.f32 %v395, %v396
        %398 = vst [vmem:[%s175 + $0x1] sm:$0x1] %v397
        %s399 = sand.u32 %s76, 1
        %s400 = scalar_lea.sflag [#allocation3], %s399
        %s401 = sand.u32 %s76, 1
        %s402 = smul.addr %s401, 128
        %s403 = scalar_lea.vmem [#allocation2], %s402
        %s404 = sand.u32 %s102, 1
        %s405 = scalar_lea.sflag [#allocation5], %s404
        %s406 = sand.u32 %s102, 1
        %s407 = smul.addr %s406, 8
        %s408 = scalar_lea.vmem [#allocation4], %s407
        // Predicated region
        $region29: #{tpu_custom_call.1} parent=27 // pred_check
          %p409 = pneg %p86
        $region30: #{tpu_custom_call.1} parent=27 // pred_check_branch
          %411 = sbr.rel (%p409) target = $region32
        $region31: #{tpu_custom_call.1} parent=27 // pred_region
          %s412 = smul.u32 16, %s21
          %414 = vsyncadd %s400, 0
          %s415 = smul.addr %s412, 8
          %s416 = scalar_lea.hbm %s2, %s415
          %s417 = sshll.u32 %s403, 4
          %s418 = int_to_ptr.vmem [resolvable:$true] %s417
          %s419 = sshll.u32 %s416, 4
          %s420 = int_to_ptr.hbm [resolvable:$true] %s419
          %425 = dma.vmem_to_hbm [thread:$0]  %s418, 2048, %s420, %s400, 128, 128, 8
        $region32: #{tpu_custom_call.1} parent=27 // pred_fallthru
          _
        // Predicated region
        $region33: #{tpu_custom_call.1} parent=27 // pred_check
          %p426 = pneg %p112
        $region34: #{tpu_custom_call.1} parent=27 // pred_check_branch
          %428 = sbr.rel (%p426) target = $region36
        $region35: #{tpu_custom_call.1} parent=27 // pred_region
          %430 = vsyncadd %s405, 0
          %s431 = smul.addr %s21, 8
          %s432 = scalar_lea.hbm %s3, %s431
          %s434 = sshll.u32 %s408, 4
          %s435 = int_to_ptr.vmem [resolvable:$true] %s434
          %s436 = sshll.u32 %s432, 4
          %s437 = int_to_ptr.hbm [resolvable:$true] %s436
          %439 = dma.vmem_to_hbm [thread:$0]  %s435, 128, %s437, %s405
        $region36: #{tpu_custom_call.1} parent=27 // pred_fallthru
          _
      $region28: #{tpu_custom_call.1} parent=5 // pred_fallthru
        _
      %p440 = scmp.le.s32.totalorder 2, %s16
      // Predicated region
      $region37: #{tpu_custom_call.1} parent=5 // pred_check
        %p441 = pneg %p440
      $region38: #{tpu_custom_call.1} parent=5 // pred_check_branch
        %443 = sbr.rel (%p441) target = $region40
      $region39: #{tpu_custom_call.1} parent=5 // pred_region
        %s444 = ssub.s32 %s16, 2
        // Predicated region
        $region41: #{tpu_custom_call.1} parent=39 // pred_check
          %p445 = pneg %p92
        $region42: #{tpu_custom_call.1} parent=39 // pred_check_branch
          %447 = sbr.rel (%p445) target = $region44
        $region43: #{tpu_custom_call.1} parent=39 // pred_region
          %s448 = sand.u32 %s77, 1
          %s449 = scalar_lea.sflag [#allocation3], %s448
          %s450 = sand.u32 %s77, 1
          %s451 = smul.addr %s450, 128
          %s452 = scalar_lea.vmem [#allocation2], %s451
          %454 = dma.done %s449, 2048
        $region44: #{tpu_custom_call.1} parent=39 // pred_fallthru
          _
        // Predicated region
        $region45: #{tpu_custom_call.1} parent=39 // pred_check
          %p455 = pneg %p118
        $region46: #{tpu_custom_call.1} parent=39 // pred_check_branch
          %457 = sbr.rel (%p455) target = $region48
        $region47: #{tpu_custom_call.1} parent=39 // pred_region
          %s458 = sand.u32 %s103, 1
          %s459 = scalar_lea.sflag [#allocation5], %s458
          %s460 = sand.u32 %s103, 1
          %s461 = smul.addr %s460, 8
          %s462 = scalar_lea.vmem [#allocation4], %s461
          %464 = dma.done %s459, 128
        $region48: #{tpu_custom_call.1} parent=39 // pred_fallthru
          _
      $region40: #{tpu_custom_call.1} parent=5 // pred_fallthru
        _
    $region6: #{tpu_custom_call.1} parent=1 // loop_footer
      %s20 = sadd.s32 1, %s16
    $region7: #{tpu_custom_call.1} parent=1 // loop_footer_branch
      %15 = sbr.rel target = $region3
    $region8: #{tpu_custom_call.1} parent=1 // loop_exit
      _
    %465 = vsyncpa [#allocation3], 1
    %s466 = scalar_lea.sflag [#allocation3], 1
    %467 = vsyncpa %s466, 1
    %468 = vsyncpa [#allocation5], 1
    %s469 = scalar_lea.sflag [#allocation5], 1
    %470 = vsyncpa %s469, 1

</llo_original>
